<compile_context>
chip_gen: v7x
topology: tpu7x:2x2x1
jax: 0.10.0
libtpu: 0.0.40
codegen_flags: <defaults>
</compile_context>

<pallas_src>
import functools

import jax
import jax.numpy as jnp
from jax import lax
from jax.experimental import pallas as pl
from jax.experimental.pallas import tpu as pltpu


def _round_up(x, m):
    return ((x + m - 1) // m) * m


def _pick_tile(dim, tile_max, align):
    """Largest tile (multiple of `align`, <= tile_max) with minimal zero-padding."""
    padded = _round_up(dim, align)
    if padded <= tile_max:
        return padded
    min_pad = padded - dim
    best_t, best_pad = align, None
    for cand in range(tile_max, align - 1, -align):
        pad = _round_up(dim, cand) - dim
        if best_pad is None or pad < best_pad:
            best_t, best_pad = cand, pad
        if best_pad == min_pad:
            break
    return best_t


def _tile_from_padded(padded, tile_max, align):
    """Largest divisor of an already-padded dim that is <= tile_max and align-multiple."""
    t = max(align, min(tile_max, padded))
    t = (t // align) * align
    while padded % t:
        t -= align
    return t


def _concat_linear_v2_kernel(x_ref, w_ref, b_ref, t_ref, hw_ref, o_ref):
    # x_ref : [TM, TK]   bf16 activation tile
    # w_ref : [TN, TK]   bf16 weight tile (PyTorch [dim_out, dim_in] layout)
    # b_ref : [1, TN]    f32 bias tile            (N-indexed only)
    # t_ref : [TM, 1]    f32 time tile            (M-indexed only)
    # hw_ref: [1, TN]    f32 hyper-bias weight    (N-indexed only)
    # o_ref : [TM, TN]   f32 output tile, resident across the K axis (acts as acc)
    k = pl.program_id(2)

    @pl.when(k == 0)
    def _():
        # Initialize with bias + t * hyper_w -> no epilogue pass needed.
        o_ref[...] = b_ref[...] + t_ref[...] * hw_ref[...]

    # Contract the last axis of both operands: x @ W^T natively on the MXU,
    # no wrapper-side transpose (Mosaic uses the transposed-weight MXU load).
    o_ref[...] += lax.dot_general(
        x_ref[...], w_ref[...],
        dimension_numbers=(((1,), (1,)), ((), ())),
        preferred_element_type=jnp.float32)


def prepare_concat_linear_v2_params(weight, bias, hyper_weight, *,
                                    tn=512, tk=2048,
                                    mxu_dtype=jnp.bfloat16):
    """One-time parameter prep (pad to tile-aligned shapes, cast W to bf16).

    Call this OUTSIDE the per-step / ODE-solver loop so the weight is not
    re-padded (full HBM read+write) on every forward call.
    """
    dim_out, dim_in = weight.shape
    TN = _pick_tile(dim_out, tn, 128)
    TK = _pick_tile(dim_in, tk, 128)
    Dop = _round_up(dim_out, TN)
    Dip = _round_up(dim_in, TK)

    weight_p = jnp.pad(weight, ((0, Dop - dim_out), (0, Dip - dim_in))).astype(mxu_dtype)
    bias_p = jnp.pad(bias.astype(jnp.float32), (0, Dop - dim_out)).reshape(1, Dop)
    hyper_p = jnp.pad(hyper_weight.reshape(-1).astype(jnp.float32),
                      (0, Dop - dim_out)).reshape(1, Dop)
    return weight_p, bias_p, hyper_p


@functools.partial(jax.jit, static_argnames=("dim_out", "tm", "tn", "tk"))
def concat_linear_v2_apply(t, x, weight_p, bias_p, hyper_p, *,
                           dim_out, tm=512, tn=512, tk=2048):
    """Forward pass given pre-padded parameters.

    t:        [B]            float
    x:        [B, dim_in]    float
    weight_p: [Dop, Dip]     bf16 (padded, from prepare_concat_linear_v2_params)
    bias_p:   [1, Dop]       f32
    hyper_p:  [1, Dop]       f32
    returns:  [B, dim_out]   f32
    """
    B, dim_in = x.shape
    Dop, Dip = weight_p.shape
    mxu_dtype = weight_p.dtype

    # Tile sizes: lane dims multiples of 128; sublane (M) multiples of 16
    # (bf16 packing).  TM/TN/TK chosen to divide the padded dims.
    TN = _tile_from_padded(Dop, tn, 128)
    TK = _tile_from_padded(Dip, tk, 128)
    TM = _pick_tile(B, tm, 16)
    Bp = _round_up(B, TM)

    # Per-call padding touches only x and t (cast to bf16 fused with the pad).
    xp = jnp.pad(x, ((0, Bp - B), (0, Dip - dim_in))).astype(mxu_dtype)
    t2 = jnp.pad(t.astype(jnp.float32), (0, Bp - B)).reshape(Bp, 1)

    n_i, n_j, n_k = Bp // TM, Dop // TN, Dip // TK
    grid = (n_i, n_j, n_k)

    cost = pl.CostEstimate(
        flops=2 * Bp * Dip * Dop,
        transcendentals=0,
        bytes_accessed=(
            2 * Bp * Dip * n_j          # x (bf16) re-streamed once per N tile
            + 2 * Dop * Dip * n_i       # W (bf16) re-streamed once per M tile
            + 4 * Bp * Dop              # output written once (f32)
            + 4 * (2 * Dop * n_i + Bp * n_j)))  # bias/hyper_w/t (small)

    out_p = pl.pallas_call(
        _concat_linear_v2_kernel,
        out_shape=jax.ShapeDtypeStruct((Bp, Dop), jnp.float32),
        grid_spec=pltpu.PrefetchScalarGridSpec(
            num_scalar_prefetch=0,
            grid=grid,
            in_specs=[
                pl.BlockSpec((TM, TK), lambda i, j, k: (i, k)),   # x
                pl.BlockSpec((TN, TK), lambda i, j, k: (j, k)),   # weight
                pl.BlockSpec((1, TN), lambda i, j, k: (0, j)),    # bias     (N only)
                pl.BlockSpec((TM, 1), lambda i, j, k: (i, 0)),    # t        (M only)
                pl.BlockSpec((1, TN), lambda i, j, k: (0, j)),    # hyper_w  (N only)
            ],
            out_specs=pl.BlockSpec((TM, TN), lambda i, j, k: (i, j)),
        ),
        compiler_params=pltpu.CompilerParams(
            dimension_semantics=("parallel", "parallel", "arbitrary")),
        cost_estimate=cost,
    )(xp, weight_p, bias_p, t2, hyper_p)

    if Bp == B and Dop == dim_out:
        return out_p
    return out_p[:B, :dim_out]


def concat_linear_v2(t, x, weight, bias, hyper_weight, *, tm=512, tn=512, tk=2048):
    """Convenience wrapper: prepare params + apply (for tests / single calls)."""
    weight_p, bias_p, hyper_p = prepare_concat_linear_v2_params(
        weight, bias, hyper_weight, tn=tn, tk=tk)
    return concat_linear_v2_apply(t, x, weight_p, bias_p, hyper_p,
                                  dim_out=weight.shape[0], tm=tm, tn=tn, tk=tk)


if __name__ == "__main__":
    key = jax.random.PRNGKey(0)

    def make_case(key, B, dim_in, dim_out):
        kx, kt, kw, kb, kh = jax.random.split(key, 5)
        x = jax.random.normal(kx, (B, dim_in), dtype=jnp.float32)
        t = jax.random.uniform(kt, (B,), dtype=jnp.float32)
        bound = 1.0 / (dim_in ** 0.5)          # PyTorch default Linear init range
        weight = jax.random.uniform(kw, (dim_out, dim_in), dtype=jnp.float32,
                                    minval=-bound, maxval=bound)
        bias = jax.random.uniform(kb, (dim_out,), dtype=jnp.float32,
                                  minval=-bound, maxval=bound)
        hyper_weight = jax.random.uniform(kh, (dim_out, 1), dtype=jnp.float32,
                                          minval=-1.0, maxval=1.0)  # fan_in = 1
        return t, x, weight, bias, hyper_weight

    def reference(t, x, weight, bias, hyper_weight):
        return x @ weight.T + bias + t.reshape(-1, 1) @ hyper_weight.T

    k1, k2, k3 = jax.random.split(key, 3)

    # bf16 MXU inputs -> loosen tolerances vs. the pure-f32 reference.
    ATOL = RTOL = 2e-2

    # Case 1: small shape consistent with the module (batch=8, hidden=32),
    # exercising the hoisted "prepare params once, apply many times" path.
    t, x, w, b, hw = make_case(k1, B=8, dim_in=32, dim_out=32)
    w_p, b_p, hw_p = prepare_concat_linear_v2_params(w, b, hw)
    out = jax.block_until_ready(
        concat_linear_v2_apply(t, x, w_p, b_p, hw_p, dim_out=w.shape[0]))
    ref = reference(t, x, w, b, hw)
    assert out.shape == ref.shape
    assert jnp.allclose(out, ref, atol=ATOL, rtol=RTOL), "mismatch vs reference (case 1)"

    # Case 2: ragged (non-tile-aligned) shapes -> exercises the padding path.
    t, x, w, b, hw = make_case(k2, B=5, dim_in=20, dim_out=48)
    out = jax.block_until_ready(concat_linear_v2(t, x, w, b, hw))
    ref = reference(t, x, w, b, hw)
    assert out.shape == ref.shape
    assert jnp.allclose(out, ref, atol=ATOL, rtol=RTOL), "mismatch vs reference (case 2)"

    # Case 3: small tk forces a multi-step K reduction -> exercises the
    # resident-output accumulation across the "arbitrary" grid axis.
    t, x, w, b, hw = make_case(k3, B=40, dim_in=300, dim_out=200)
    out = jax.block_until_ready(concat_linear_v2(t, x, w, b, hw, tk=128, tn=128))
    ref = reference(t, x, w, b, hw)
    assert out.shape == ref.shape
    assert jnp.allclose(out, ref, atol=ATOL, rtol=RTOL), "mismatch vs reference (case 3)"

    print("KERNEL_OK")
</pallas_src>

<mosaic_0001>
module attributes {stable_mosaic.version = 11 : i64} {
  func.func @_concat_linear_v2_kernel(%arg0: i32, %arg1: i32, %arg2: i32, %arg3: memref<16x128xbf16, #tpu.memory_space<vmem>>, %arg4: memref<128x128xbf16, #tpu.memory_space<vmem>>, %arg5: memref<1x128xf32, #tpu.memory_space<vmem>>, %arg6: memref<16x1xf32, #tpu.memory_space<vmem>>, %arg7: memref<1x128xf32, #tpu.memory_space<vmem>>, %arg8: memref<16x128xf32, #tpu.memory_space<vmem>>) attributes {dimension_semantics = [#tpu.dimension_semantics<parallel>, #tpu.dimension_semantics<parallel>, #tpu.dimension_semantics<arbitrary>], iteration_bounds = array<i64: 1, 1, 1>, scalar_prefetch = 0 : i64, scratch_operands = 0 : i64, tpu.core_type = #tpu.core_type<tc>, window_params = [{transform_indices = @transform_0, window_bounds = array<i64: 16, 128>}, {transform_indices = @transform_1, window_bounds = array<i64: 128, 128>}, {transform_indices = @transform_2, window_bounds = array<i64: 1, 128>}, {transform_indices = @transform_3, window_bounds = array<i64: 16, 1>}, {transform_indices = @transform_4, window_bounds = array<i64: 1, 128>}, {transform_indices = @transform_5, window_bounds = array<i64: 16, 128>}]} {
    %c0_i32 = arith.constant 0 : i32
    %0 = arith.cmpi eq, %arg2, %c0_i32 : i32
    %1 = arith.extui %0 : i1 to i32
    %c0_i32_0 = arith.constant 0 : i32
    %2 = arith.cmpi ne, %1, %c0_i32_0 : i32
    scf.if %2 {
      %c0_8 = arith.constant 0 : index
      %c0_9 = arith.constant 0 : index
      %9 = vector.load %arg5[%c0_8, %c0_9] : memref<1x128xf32, #tpu.memory_space<vmem>>, vector<1x128xf32>
      %c0_10 = arith.constant 0 : index
      %c0_11 = arith.constant 0 : index
      %10 = vector.load %arg6[%c0_10, %c0_11] : memref<16x1xf32, #tpu.memory_space<vmem>>, vector<16x1xf32>
      %c0_12 = arith.constant 0 : index
      %c0_13 = arith.constant 0 : index
      %11 = vector.load %arg7[%c0_12, %c0_13] : memref<1x128xf32, #tpu.memory_space<vmem>>, vector<1x128xf32>
      %12 = vector.broadcast %10 : vector<16x1xf32> to vector<16x128xf32>
      %13 = vector.broadcast %11 : vector<1x128xf32> to vector<16x128xf32>
      %14 = arith.mulf %12, %13 : vector<16x128xf32>
      %15 = vector.broadcast %9 : vector<1x128xf32> to vector<16x128xf32>
      %16 = arith.addf %15, %14 : vector<16x128xf32>
      %c0_14 = arith.constant 0 : index
      %c0_15 = arith.constant 0 : index
      %17 = vector.load %arg8[%c0_14, %c0_15] : memref<16x128xf32, #tpu.memory_space<vmem>>, vector<16x128xf32>
      tpu.vector_store %arg8[%c0_14, %c0_15], %16 {strides = array<i32>} : memref<16x128xf32, #tpu.memory_space<vmem>>, vector<16x128xf32>,
    } else {
    }
    %c0 = arith.constant 0 : index
    %c0_1 = arith.constant 0 : index
    %3 = vector.load %arg8[%c0, %c0_1] : memref<16x128xf32, #tpu.memory_space<vmem>>, vector<16x128xf32>
    %c0_2 = arith.constant 0 : index
    %c0_3 = arith.constant 0 : index
    %4 = vector.load %arg3[%c0_2, %c0_3] : memref<16x128xbf16, #tpu.memory_space<vmem>>, vector<16x128xbf16>
    %c0_4 = arith.constant 0 : index
    %c0_5 = arith.constant 0 : index
    %5 = vector.load %arg4[%c0_4, %c0_5] : memref<128x128xbf16, #tpu.memory_space<vmem>>, vector<128x128xbf16>
    %cst = arith.constant dense<0.000000e+00> : vector<16x128xf32>
    %6 = tpu.matmul %4, %5, %cst {dimension_numbers = #tpu.dot_dimension_numbers<[1], [1], [0], [0], [0, 0, 1, 0], [], []>} : vector<16x128xbf16>, vector<128x128xbf16>, vector<16x128xf32> -> vector<16x128xf32>
    %7 = arith.addf %3, %6 : vector<16x128xf32>
    %c0_6 = arith.constant 0 : index
    %c0_7 = arith.constant 0 : index
    %8 = vector.load %arg8[%c0_6, %c0_7] : memref<16x128xf32, #tpu.memory_space<vmem>>, vector<16x128xf32>
    tpu.vector_store %arg8[%c0_6, %c0_7], %7 {strides = array<i32>} : memref<16x128xf32, #tpu.memory_space<vmem>>, vector<16x128xf32>,
    return
  }
  func.func @transform_0(%arg0: i32, %arg1: i32, %arg2: i32) -> (i32, i32) {
    %c0_i32 = arith.constant 0 : i32
    return %arg0, %arg2 : i32, i32
  }
  func.func @transform_1(%arg0: i32, %arg1: i32, %arg2: i32) -> (i32, i32) {
    %c0_i32 = arith.constant 0 : i32
    return %arg1, %arg2 : i32, i32
  }
  func.func @transform_2(%arg0: i32, %arg1: i32, %arg2: i32) -> (i32, i32) {
    %c0_i32 = arith.constant 0 : i32
    %c0_i32_0 = arith.constant 0 : i32
    return %c0_i32, %arg1 : i32, i32
  }
  func.func @transform_3(%arg0: i32, %arg1: i32, %arg2: i32) -> (i32, i32) {
    %c0_i32 = arith.constant 0 : i32
    %c0_i32_0 = arith.constant 0 : i32
    return %arg0, %c0_i32 : i32, i32
  }
  func.func @transform_4(%arg0: i32, %arg1: i32, %arg2: i32) -> (i32, i32) {
    %c0_i32 = arith.constant 0 : i32
    %c0_i32_0 = arith.constant 0 : i32
    return %c0_i32, %arg1 : i32, i32
  }
  func.func @transform_5(%arg0: i32, %arg1: i32, %arg2: i32) -> (i32, i32) {
    %c0_i32 = arith.constant 0 : i32
    return %arg0, %arg1 : i32, i32
  }
}

</mosaic_0001>

<llo_original>
// kernel: concat_linear_v2_apply.1
$region0: #{concat_linear_v2_apply.1}
  #allocation0 [shape = 'u32[]', space=smem, size = 0x4, offset = 0x4, fixed_abs, tag = 'smem constant byte address 0x4 - core index']
  #allocation1 [shape = 'u32[144,128]{1,0:T(1,128)}', space=vmem, size = 0x12000, scoped, tag = 'internal scratch']
  %s0 = inlined_call_operand.vmem [shape: bf16[16,128], index: 0, kind: input, shape index: {}]
  %s1 = inlined_call_operand.hbm [shape: bf16[128,128], index: 1, kind: input, shape index: {}]
  %s2 = inlined_call_operand.vmem [shape: f32[1,128], index: 2, kind: input, shape index: {}]
  %s3 = inlined_call_operand.vmem [shape: f32[16,1], index: 3, kind: input, shape index: {}]
  %s4 = inlined_call_operand.vmem [shape: f32[1,128], index: 4, kind: input, shape index: {}]
  %s5 = inlined_call_operand.vmem [shape: f32[16,128], index: 5, kind: output, shape index: {}]
  %s6 = sld [smem:[#allocation0]]
  $region38: #{concat_linear_v2_apply.1} parent=0
    _
  %s8 = ssub.s32 1, %s6
  %s9 = scalar_select 0, %s8, %s6
  $region1: #{concat_linear_v2_apply.1} parent=0
    #allocation2 [shape = 'u8[32768]{0}', space=vmem, size = 0x8000, scoped, tag = 'input window, operand 1, single buffered']
    #allocation3 [shape = 's32[1]{0}', space=sflag, size = 0x4, scoped, tag = 'scoped memory for concat_linear_v2_apply.1']
    %10 = vsyncpa [#allocation3], 0
    // Predicated region
    $region2: #{concat_linear_v2_apply.1} parent=1 // pred_check
      _
    $region3: #{concat_linear_v2_apply.1} parent=1 // pred_check_branch
      %12 = sbr.rel (0) target = $region5
    $region4: #{concat_linear_v2_apply.1} parent=1 // pred_region
      _
    $region5: #{concat_linear_v2_apply.1} parent=1 // pred_fallthru
      _
    // Predicated region
    $region6: #{concat_linear_v2_apply.1} parent=1 // pred_check
      _
    $region7: #{concat_linear_v2_apply.1} parent=1 // pred_check_branch
      %14 = sbr.rel (0) target = $region9
    $region8: #{concat_linear_v2_apply.1} parent=1 // pred_region
      %s16 = ssub.s32 1024, 1024
      %17 = vsyncadd [#allocation3], %s16
      %s18 = sshll.u32 [#allocation2], 4
      %s19 = int_to_ptr.vmem [resolvable:$true] %s18
      %24 = dma.hbm_to_vmem [thread:$0]  %s1, 1024, %s19, [#allocation3], 64, 64, 4
    $region9: #{concat_linear_v2_apply.1} parent=1 // pred_fallthru
      _
    // Predicated region
    $region10: #{concat_linear_v2_apply.1} parent=1 // pred_check
      _
    $region11: #{concat_linear_v2_apply.1} parent=1 // pred_check_branch
      %26 = sbr.rel (0) target = $region13
    $region12: #{concat_linear_v2_apply.1} parent=1 // pred_region
      _
    $region13: #{concat_linear_v2_apply.1} parent=1 // pred_fallthru
      _
    // Predicated region
    $region14: #{concat_linear_v2_apply.1} parent=1 // pred_check
      _
    $region15: #{concat_linear_v2_apply.1} parent=1 // pred_check_branch
      %28 = sbr.rel (0) target = $region17
    $region16: #{concat_linear_v2_apply.1} parent=1 // pred_region
      _
    $region17: #{concat_linear_v2_apply.1} parent=1 // pred_fallthru
      _
    // Predicated region
    $region18: #{concat_linear_v2_apply.1} parent=1 // pred_check
      _
    $region19: #{concat_linear_v2_apply.1} parent=1 // pred_check_branch
      %30 = sbr.rel (0) target = $region21
    $region20: #{concat_linear_v2_apply.1} parent=1 // pred_region
      _
    $region21: #{concat_linear_v2_apply.1} parent=1 // pred_fallthru
      _
    // Predicated region
    $region22: #{concat_linear_v2_apply.1} parent=1 // pred_check
      _
    $region23: #{concat_linear_v2_apply.1} parent=1 // pred_check_branch
      %32 = sbr.rel (0) target = $region25
    $region24: #{concat_linear_v2_apply.1} parent=1 // pred_region
      %33 = dma.done [#allocation3], 1024
    $region25: #{concat_linear_v2_apply.1} parent=1 // pred_fallthru
      _
    %p35 = scmp.eq.s32.totalorder 0, 0
    // Predicated region
    $region26: #{concat_linear_v2_apply.1} parent=1 // pred_check
      %p36 = pneg %p35
    $region27: #{concat_linear_v2_apply.1} parent=1 // pred_check_branch
      %38 = sbr.rel (%p36) target = $region29
    $region28: #{concat_linear_v2_apply.1} parent=1 // pred_region
      %v39 = vld [vmem:[%s2] sm:$0x1]
      %v40 = vld [vmem:[%s3] sm:$0xff]
      %v41 = vld [vmem:[%s3 + $0x8] sm:$0xff]
      %v42 = vld [vmem:[%s4] sm:$0x1]
      %44 = vset.pattern.permute.xlu0 0
      %45 = vperm.xlu0 %44, %v40
      %v46 = vpop.permute.xlu0 %45
      %49 = vset.pattern.permute.xlu0 0
      %50 = vperm.xlu0 %49, %v41
      %v51 = vpop.permute.xlu0 %50
      %v54 = vlaneseq
      %v55 = vshrl.u32 %v54, 7
      %v56 = vsub.s32 0, %v55
      %v57 = vrot.slane %v42, %v56
      %v59 = vmul.f32 %v46, %v57
      %v60 = vmul.f32 %v51, %v57
      %v62 = vlaneseq
      %v63 = vshrl.u32 %v62, 7
      %v64 = vsub.s32 0, %v63
      %v65 = vrot.slane %v39, %v64
      %v67 = vadd.f32 %v65, %v59
      %v68 = vadd.f32 %v65, %v60
      %69 = vst [vmem:[%s5] sm:$0xff] %v67
      %70 = vst [vmem:[%s5 + $0x8] sm:$0xff] %v68
    $region29: #{concat_linear_v2_apply.1} parent=1 // pred_fallthru
      _
    %v71 = vld [vmem:[%s5] sm:$0xff]
    %v72 = vld [vmem:[%s5 + $0x8] sm:$0xff]
    %v73 = vld [vmem:[%s0] sm:$0xf]
    %v74 = vld [vmem:[%s0 + $0x4] sm:$0xf]
    %v75 = vld [vmem:[#allocation2] sm:$0xf]
    %v76 = vld [vmem:[#allocation2 + $0x4] sm:$0xf]
    %v77 = vld [vmem:[#allocation2 + $0x8] sm:$0xf]
    %v78 = vld [vmem:[#allocation2 + $0xc] sm:$0xf]
    %v79 = vld [vmem:[#allocation2 + $0x10] sm:$0xf]
    %v80 = vld [vmem:[#allocation2 + $0x14] sm:$0xf]
    %v81 = vld [vmem:[#allocation2 + $0x18] sm:$0xf]
    %v82 = vld [vmem:[#allocation2 + $0x1c] sm:$0xf]
    %v83 = vld [vmem:[#allocation2 + $0x20] sm:$0xf]
    %v84 = vld [vmem:[#allocation2 + $0x24] sm:$0xf]
    %v85 = vld [vmem:[#allocation2 + $0x28] sm:$0xf]
    %v86 = vld [vmem:[#allocation2 + $0x2c] sm:$0xf]
    %v87 = vld [vmem:[#allocation2 + $0x30] sm:$0xf]
    %v88 = vld [vmem:[#allocation2 + $0x34] sm:$0xf]
    %v89 = vld [vmem:[#allocation2 + $0x38] sm:$0xf]
    %v90 = vld [vmem:[#allocation2 + $0x3c] sm:$0xf]
    %v93 = vunpack.c.l.b16 %v73
    %v94 = vunpack.c.l.b16 %v74
    %v95 = vpack.c.b16 %v94, %v93
    %v113 = vunpack.c.l.b16 %v75
    %v114 = vunpack.c.l.b16 %v76
    %v115 = vunpack.c.l.b16 %v77
    %v116 = vunpack.c.l.b16 %v78
    %v117 = vunpack.c.l.b16 %v79
    %v118 = vunpack.c.l.b16 %v80
    %v119 = vunpack.c.l.b16 %v81
    %v120 = vunpack.c.l.b16 %v82
    %v121 = vunpack.c.l.b16 %v83
    %v122 = vunpack.c.l.b16 %v84
    %v123 = vunpack.c.l.b16 %v85
    %v124 = vunpack.c.l.b16 %v86
    %v125 = vunpack.c.l.b16 %v87
    %v126 = vunpack.c.l.b16 %v88
    %v127 = vunpack.c.l.b16 %v89
    %v128 = vunpack.c.l.b16 %v90
    %v129 = vpack.c.b16 %v114, %v113
    %v130 = vpack.c.b16 %v116, %v115
    %v131 = vpack.c.b16 %v118, %v117
    %v132 = vpack.c.b16 %v120, %v119
    %v133 = vpack.c.b16 %v122, %v121
    %v134 = vpack.c.b16 %v124, %v123
    %v135 = vpack.c.b16 %v126, %v125
    %v136 = vpack.c.b16 %v128, %v127
    %145 = vmatprep.subr.bf16.mxu0 0
    %146 = vmatpush1.bf16.xpose.msra.mxu0 %v129
    %147 = vmatprep.subr.bf16.mxu0 0
    %148 = vmatpush1.bf16.xpose.msra.mxu0 %v130
    %149 = vmatprep.subr.bf16.mxu0 0
    %150 = vmatpush1.bf16.xpose.msra.mxu0 %v131
    %151 = vmatprep.subr.bf16.mxu0 0
    %152 = vmatpush1.bf16.xpose.msra.mxu0 %v132
    %153 = vmatprep.subr.bf16.mxu0 0
    %154 = vmatpush1.bf16.xpose.msra.mxu0 %v133
    %155 = vmatprep.subr.bf16.mxu0 0
    %156 = vmatpush1.bf16.xpose.msra.mxu0 %v134
    %157 = vmatprep.subr.bf16.mxu0 0
    %158 = vmatpush1.bf16.xpose.msra.mxu0 %v135
    %159 = vmatprep.subr.bf16.mxu0 0
    %160 = vmatpush1.bf16.xpose.msra.mxu0 %v136
    %161 = vmatprep.subr.bf16.mxu0 0
    %162 = vmatpush1.bf16.xpose.msra.mxu0 0
    %163 = vmatprep.subr.bf16.mxu0 0
    %164 = vmatpush1.bf16.xpose.msra.mxu0 0
    %165 = vmatprep.subr.bf16.mxu0 0
    %166 = vmatpush1.bf16.xpose.msra.mxu0 0
    %167 = vmatprep.subr.bf16.mxu0 0
    %168 = vmatpush1.bf16.xpose.msra.mxu0 0
    %169 = vmatprep.subr.bf16.mxu0 0
    %170 = vmatpush1.bf16.xpose.msra.mxu0 0
    %171 = vmatprep.subr.bf16.mxu0 0
    %172 = vmatpush1.bf16.xpose.msra.mxu0 0
    %173 = vmatprep.subr.bf16.mxu0 0
    %174 = vmatpush1.bf16.xpose.msra.mxu0 0
    %175 = vmatprep.subr.bf16.mxu0 0
    %176 = vmatpush1.bf16.xpose.msra.mxu0 0
    %177 = vmatprep.mubr.bf16.mxu0 0
    %178 = vmatmul.mubr.bf16.gmra.mrb[0].mxu0 %v95
    %v179 = vpop.f32.mrb[0].mxu0
    %v180 = vadd.f32 0.0, %v179
    %v181 = vpop.f32.mrb[0].mxu0
    %v182 = vpop.f32.mrb[0].mxu0
    %v183 = vadd.f32 0.0, %v182
    %v184 = vpop.f32.mrb[0].mxu0
    %185 = vdwg.mxu0
    %v186 = vadd.f32 %v71, %v180
    %v187 = vadd.f32 %v72, %v183
    %188 = vst [vmem:[%s5] sm:$0xff] %v186
    %189 = vst [vmem:[%s5 + $0x8] sm:$0xff] %v187
    // Predicated region
    $region30: #{concat_linear_v2_apply.1} parent=1 // pred_check
      _
    $region31: #{concat_linear_v2_apply.1} parent=1 // pred_check_branch
      %191 = sbr.rel (0) target = $region33
    $region32: #{concat_linear_v2_apply.1} parent=1 // pred_region
      _
    $region33: #{concat_linear_v2_apply.1} parent=1 // pred_fallthru
      _
    // Predicated region
    $region34: #{concat_linear_v2_apply.1} parent=1 // pred_check
      _
    $region35: #{concat_linear_v2_apply.1} parent=1 // pred_check_branch
      %193 = sbr.rel (0) target = $region37
    $region36: #{concat_linear_v2_apply.1} parent=1 // pred_region
      _
    $region37: #{concat_linear_v2_apply.1} parent=1 // pred_fallthru
      _
    %194 = vsyncpa [#allocation3], 1

</llo_original>
